<compile_context>
chip_gen: v7x
topology: tpu7x:2x2x1
jax: 0.10.0
libtpu: 0.0.40
codegen_flags: <defaults>
</compile_context>

<pallas_src>
import jax
import jax.numpy as jnp
from jax.experimental import pallas as pl
from jax.experimental.pallas import tpu as pltpu

_LANES = 128


def _round_up(n, m):
    return ((n + m - 1) // m) * m


# --------------------------------------------------------------------------- kernels
def _mlp_kernel_plain(x_ref, w1_ref, b1_ref, w2_ref, b2_ref, o_ref):
    # x_ref: (tb, D); w1_ref: (D, 16); b1_ref: (1, 16); w2_ref: (1, 16); b2_ref: (1, 1)
    h = jnp.dot(x_ref[...], w1_ref[...], preferred_element_type=jnp.float32)  # MXU
    h = jnp.maximum(h + b1_ref[...], 0.0)                                     # VPU
    # 16 -> 1: VPU multiply + 16-wide lane reduce (a (16,1) MXU matmul would waste a
    # full push/pop for a single output column).
    y = jnp.sum(h * w2_ref[...], axis=-1, keepdims=True)                      # (tb, 1)
    o_ref[...] = (y + b2_ref[...]).astype(o_ref.dtype)


def _mlp_kernel_packed(x_ref, w1_ref, b1_ref, w2_ref, b2_ref, o_ref):
    # Lane-packed: each (1, 128) row of x_ref holds p = 128//D original rows.
    # w1_ref: (128, p*16) block-diagonal; b1_ref: (1, p*16) tiled bias;
    # w2_ref: (p*16, p) block-diagonal; o_ref: (tb, p) -> column j is original row
    # i*p + j of the batch.
    h = jnp.dot(x_ref[...], w1_ref[...], preferred_element_type=jnp.float32)  # MXU
    h = jnp.maximum(h + b1_ref[...], 0.0)                                     # VPU
    y = jnp.dot(h, w2_ref[...], preferred_element_type=jnp.float32)           # MXU, K=p*16
    o_ref[...] = (y + b2_ref[...]).astype(o_ref.dtype)


# --------------------------------------------------------------------------- wrapper
def simpler_net_forward(x, w1, b1, w2, b2, *, target_x_tile_bytes=4 << 20):
    """x: (B, D); w1: (D, 16); b1: (1, 16) or (16,); w2: (16, 1); b2: (1, 1) or (1,).

    Returns (B, 1) float32 = relu(x @ w1 + b1) @ w2 + b2.
    """
    B, D = x.shape
    H = w1.shape[1]
    O = w2.shape[1]
    b1 = b1.reshape(1, H)
    b2 = b2.reshape(1, O)

    itemsize = jnp.dtype(x.dtype).itemsize
    align = {4: 8, 2: 16, 1: 32}.get(itemsize, 8)   # sublane multiple per dtype

    # ---- lane packing (small D): pack p = 128//D rows into one 128-lane row --------
    p = _LANES // D if (D < _LANES and _LANES % D == 0) else 1
    packed = (p > 1) and (B % p == 0)

    if packed:
        n_rows, d_eff, o_eff = B // p, p * D, p
        x_k = x.reshape(n_rows, d_eff)                       # free: row-major contiguous
        eye = jnp.eye(p, dtype=w1.dtype)
        w1_k = jnp.kron(eye, w1)                             # (128, p*16) block-diagonal
        b1_k = jnp.tile(b1, (1, p))                          # (1, p*16)
        w2_k = jnp.kron(eye.astype(w2.dtype), w2)            # (p*16, p) block-diagonal
        kernel = _mlp_kernel_packed
    else:
        n_rows, d_eff, o_eff = B, D, O
        x_k, w1_k, b1_k, w2_k = x, w1, b1, w2.reshape(1, H)  # w2 as a VPU row
        kernel = _mlp_kernel_plain

    # ---- batch tile from an explicit VMEM budget -----------------------------------
    # Per-row VMEM cost of the x tile includes the 128-lane padding of its last dim.
    row_bytes_vmem = _round_up(d_eff, _LANES) * itemsize
    tb = max(align, (target_x_tile_bytes // row_bytes_vmem) // align * align)
    # >= 2 grid blocks whenever possible so ("parallel",) feeds both v7x TensorCores.
    tb = min(tb, max(align, _round_up(pl.cdiv(n_rows, 2), align)))
    tb = min(tb, _round_up(n_rows, align))
    n_blocks = pl.cdiv(n_rows, tb)                            # last block may be partial

    # ---- VMEM accounting (padded tiles, 2 buffers each) & scoped limit -------------
    def _tile_bytes(r, c, isz):
        return _round_up(r, 8) * _round_up(c, _LANES) * isz

    vmem_est = 2 * (
        _tile_bytes(tb, d_eff, itemsize)                      # x tile (double-buffered)
        + _tile_bytes(tb, o_eff, 4)                           # out tile
        + _tile_bytes(*w1_k.shape, w1_k.dtype.itemsize)       # resident weights still
        + _tile_bytes(*b1_k.shape, b1_k.dtype.itemsize)       #   get 2 buffers + lane
        + _tile_bytes(*w2_k.shape, w2_k.dtype.itemsize)       #   padding in VMEM
        + _tile_bytes(*b2.shape, b2.dtype.itemsize)
    )
    # >= default 32 MiB, <= 48 MiB so it stays inside v7x's 64 MiB physical VMEM.
    vmem_limit = int(min(48 << 20, max(32 << 20, 2 * vmem_est)))

    cost = pl.CostEstimate(
        flops=2 * B * D * H + 2 * B * H * O,
        transcendentals=0,
        bytes_accessed=int(
            B * D * itemsize + B * O * 4
            + w1_k.size * w1_k.dtype.itemsize + b1_k.size * b1_k.dtype.itemsize
            + w2_k.size * w2_k.dtype.itemsize + b2.size * b2.dtype.itemsize
        ),
    )

    out = pl.pallas_call(
        kernel,
        out_shape=jax.ShapeDtypeStruct((n_rows, o_eff), jnp.float32),
        grid=(n_blocks,),
        in_specs=[
            # x: streamed tile-by-tile; Pallas double-buffers the HBM->VMEM DMA and
            # masks the ragged last block (no wrapper-side jnp.pad).
            pl.BlockSpec((tb, d_eff), lambda i: (i, 0)),
            # Weights/biases: same block index every step -> fetched once, resident
            # in VMEM across the whole batch loop.
            pl.BlockSpec(w1_k.shape, lambda i: (0, 0)),
            pl.BlockSpec(b1_k.shape, lambda i: (0, 0)),
            pl.BlockSpec(w2_k.shape, lambda i: (0, 0)),
            pl.BlockSpec(b2.shape, lambda i: (0, 0)),
        ],
        out_specs=pl.BlockSpec((tb, o_eff), lambda i: (i, 0)),
        compiler_params=pltpu.CompilerParams(
            dimension_semantics=("parallel",),   # batch tiles are independent
            vmem_limit_bytes=vmem_limit,
        ),
        cost_estimate=cost,
    )(x_k, w1_k, b1_k, w2_k, b2)

    # Packed output (B//p, p) flattens row-major to exactly batch order.
    return out.reshape(B, O)


def init_params(key, input_dim, hidden=16, out=1):
    """PyTorch default Linear init: U[-1/sqrt(fan_in), 1/sqrt(fan_in)]."""
    k1, k2, k3, k4 = jax.random.split(key, 4)
    bound1 = 1.0 / jnp.sqrt(jnp.float32(input_dim))
    bound2 = 1.0 / jnp.sqrt(jnp.float32(hidden))
    w1 = jax.random.uniform(k1, (input_dim, hidden), jnp.float32, -bound1, bound1)
    b1 = jax.random.uniform(k2, (1, hidden), jnp.float32, -bound1, bound1)
    w2 = jax.random.uniform(k3, (hidden, out), jnp.float32, -bound2, bound2)
    b2 = jax.random.uniform(k4, (1, out), jnp.float32, -bound2, bound2)
    return w1, b1, w2, b2


if __name__ == "__main__":
    key = jax.random.PRNGKey(0)
    k_p, k1, k2, k3 = jax.random.split(key, 4)

    input_dim = 32
    w1, b1, w2, b2 = init_params(k_p, input_dim)

    def reference(x):
        return jnp.maximum(x @ w1 + b1, 0.0) @ w2 + b2

    # 1) Small batch, lane-packed path (D=32 -> p=4, B % 4 == 0).
    x1 = jax.random.normal(k1, (8, input_dim), jnp.float32)
    o1 = jax.block_until_ready(simpler_net_forward(x1, w1, b1, w2, b2))
    assert o1.shape == (8, 1)
    assert jnp.allclose(o1, reference(x1), atol=1e-4, rtol=1e-4)

    # 2) Ragged batch (1000 rows): packed path, multi-block grid, Pallas-masked
    #    partial last block, no wrapper pad.
    x2 = jax.random.normal(k2, (1000, input_dim), jnp.float32)
    o2 = jax.block_until_ready(simpler_net_forward(x2, w1, b1, w2, b2))
    assert o2.shape == (1000, 1)
    assert jnp.allclose(o2, reference(x2), atol=1e-4, rtol=1e-4)

    # 3) Batch not divisible by the packing factor -> plain (unpacked) path with a
    #    masked partial block.
    x3 = jax.random.normal(k3, (10, input_dim), jnp.float32)
    o3 = jax.block_until_ready(simpler_net_forward(x3, w1, b1, w2, b2))
    assert o3.shape == (10, 1)
    assert jnp.allclose(o3, reference(x3), atol=1e-4, rtol=1e-4)

    print("KERNEL_OK")
</pallas_src>

<mosaic_0001>
module attributes {stable_mosaic.version = 11 : i64} {
  func.func @_mlp_kernel_packed(%arg0: i32, %arg1: memref<8x128xf32, #tpu.memory_space<vmem>>, %arg2: memref<128x64xf32, #tpu.memory_space<vmem>>, %arg3: memref<1x64xf32, #tpu.memory_space<vmem>>, %arg4: memref<64x4xf32, #tpu.memory_space<vmem>>, %arg5: memref<1x1xf32, #tpu.memory_space<vmem>>, %arg6: memref<8x4xf32, #tpu.memory_space<vmem>>) attributes {dimension_semantics = [#tpu.dimension_semantics<parallel>], iteration_bounds = array<i64: 1>, scalar_prefetch = 0 : i64, scratch_operands = 0 : i64, tpu.core_type = #tpu.core_type<tc>, window_params = [{transform_indices = @transform_0, window_bounds = array<i64: 8, 128>}, {pipeline_mode = #tpu.pipeline_mode<synchronous>, transform_indices = @transform_1, window_bounds = array<i64: 128, 64>}, {pipeline_mode = #tpu.pipeline_mode<synchronous>, transform_indices = @transform_2, window_bounds = array<i64: 1, 64>}, {pipeline_mode = #tpu.pipeline_mode<synchronous>, transform_indices = @transform_3, window_bounds = array<i64: 64, 4>}, {pipeline_mode = #tpu.pipeline_mode<synchronous>, transform_indices = @transform_4, window_bounds = array<i64: 1, 1>}, {transform_indices = @transform_5, window_bounds = array<i64: 8, 4>}]} {
    %c0 = arith.constant 0 : index
    %c0_0 = arith.constant 0 : index
    %0 = vector.load %arg1[%c0, %c0_0] : memref<8x128xf32, #tpu.memory_space<vmem>>, vector<8x128xf32>
    %c0_1 = arith.constant 0 : index
    %c0_2 = arith.constant 0 : index
    %1 = vector.load %arg2[%c0_1, %c0_2] : memref<128x64xf32, #tpu.memory_space<vmem>>, vector<128x64xf32>
    %cst = arith.constant dense<0.000000e+00> : vector<8x64xf32>
    %2 = tpu.matmul %0, %1, %cst {dimension_numbers = #tpu.dot_dimension_numbers<[1], [0], [0], [1], [0, 0, 1, 1], [], []>} : vector<8x128xf32>, vector<128x64xf32>, vector<8x64xf32> -> vector<8x64xf32>
    %c0_3 = arith.constant 0 : index
    %c0_4 = arith.constant 0 : index
    %3 = vector.load %arg3[%c0_3, %c0_4] : memref<1x64xf32, #tpu.memory_space<vmem>>, vector<1x64xf32>
    %4 = vector.broadcast %3 : vector<1x64xf32> to vector<8x64xf32>
    %5 = arith.addf %2, %4 : vector<8x64xf32>
    %cst_5 = arith.constant 0.000000e+00 : f32
    %6 = vector.broadcast %cst_5 : f32 to vector<8x64xf32>
    %7 = arith.maximumf %5, %6 : vector<8x64xf32>
    %c0_6 = arith.constant 0 : index
    %c0_7 = arith.constant 0 : index
    %8 = vector.load %arg4[%c0_6, %c0_7] : memref<64x4xf32, #tpu.memory_space<vmem>>, vector<64x4xf32>
    %cst_8 = arith.constant dense<0.000000e+00> : vector<8x4xf32>
    %9 = tpu.matmul %7, %8, %cst_8 {dimension_numbers = #tpu.dot_dimension_numbers<[1], [0], [0], [1], [0, 0, 1, 1], [], []>} : vector<8x64xf32>, vector<64x4xf32>, vector<8x4xf32> -> vector<8x4xf32>
    %c0_9 = arith.constant 0 : index
    %c0_10 = arith.constant 0 : index
    %10 = vector.load %arg5[%c0_9, %c0_10] : memref<1x1xf32, #tpu.memory_space<vmem>>, vector<1x1xf32>
    %11 = vector.broadcast %10 : vector<1x1xf32> to vector<8x4xf32>
    %12 = arith.addf %9, %11 : vector<8x4xf32>
    %c0_11 = arith.constant 0 : index
    %c0_12 = arith.constant 0 : index
    %13 = vector.load %arg6[%c0_11, %c0_12] : memref<8x4xf32, #tpu.memory_space<vmem>>, vector<8x4xf32>
    tpu.vector_store %arg6[%c0_11, %c0_12], %12 {strides = array<i32>} : memref<8x4xf32, #tpu.memory_space<vmem>>, vector<8x4xf32>,
    return
  }
  func.func @transform_0(%arg0: i32) -> (i32, i32) {
    %c0_i32 = arith.constant 0 : i32
    %c0_i32_0 = arith.constant 0 : i32
    return %arg0, %c0_i32 : i32, i32
  }
  func.func @transform_1(%arg0: i32) -> (i32, i32) {
    %c0_i32 = arith.constant 0 : i32
    %c0_i32_0 = arith.constant 0 : i32
    %c0_i32_1 = arith.constant 0 : i32
    return %c0_i32, %c0_i32_0 : i32, i32
  }
  func.func @transform_2(%arg0: i32) -> (i32, i32) {
    %c0_i32 = arith.constant 0 : i32
    %c0_i32_0 = arith.constant 0 : i32
    %c0_i32_1 = arith.constant 0 : i32
    return %c0_i32, %c0_i32_0 : i32, i32
  }
  func.func @transform_3(%arg0: i32) -> (i32, i32) {
    %c0_i32 = arith.constant 0 : i32
    %c0_i32_0 = arith.constant 0 : i32
    %c0_i32_1 = arith.constant 0 : i32
    return %c0_i32, %c0_i32_0 : i32, i32
  }
  func.func @transform_4(%arg0: i32) -> (i32, i32) {
    %c0_i32 = arith.constant 0 : i32
    %c0_i32_0 = arith.constant 0 : i32
    %c0_i32_1 = arith.constant 0 : i32
    return %c0_i32, %c0_i32_0 : i32, i32
  }
  func.func @transform_5(%arg0: i32) -> (i32, i32) {
    %c0_i32 = arith.constant 0 : i32
    %c0_i32_0 = arith.constant 0 : i32
    return %arg0, %c0_i32 : i32, i32
  }
}

</mosaic_0001>

<llo_original>
// kernel: tpu_custom_call.1
$region0: #{tpu_custom_call.1}
  #allocation0 [shape = 'u32[]', space=smem, size = 0x4, offset = 0x4, fixed_abs, tag = 'smem constant byte address 0x4 - core index']
  #allocation1 [shape = 'u32[144,128]{1,0:T(1,128)}', space=vmem, size = 0x12000, scoped, tag = 'internal scratch']
  #allocation2 [shape = 'f32[1,1]{1,0:T(1,128)S(1)}', space=vmem, size = 0x200, scoped, tag = 'scoped memory for tpu_custom_call.1']
  %s0 = inlined_call_operand.vmem [shape: f32[2,128], index: 0, kind: input, shape index: {}]
  %s1 = inlined_call_operand.vmem [shape: f32[128,64], index: 1, kind: input, shape index: {}]
  %s2 = inlined_call_operand.vmem [shape: f32[1,64], index: 2, kind: input, shape index: {}]
  %s3 = inlined_call_operand.vmem [shape: f32[64,4], index: 3, kind: input, shape index: {}]
  %s4 = inlined_call_operand.<no memory space> [shape: f32[1,1], index: 4, kind: input, shape index: {}]
  %s5 = inlined_call_operand.hbm [shape: f32[2,4], index: 5, kind: output, shape index: {}]
  %s6 = sld [smem:[#allocation0]]
  $region30: #{tpu_custom_call.1} parent=0
    _
  %s8 = ssub.s32 1, %s6
  %s9 = scalar_select 0, %s8, %s6
  %v10 = vstv %s4
  %11 = vst [vmem:[#allocation2] sm:$0x1] %v10
  $region1: #{tpu_custom_call.1} parent=0
    #allocation3 [shape = 'u8[4096]{0}', space=vmem, size = 0x1000, scoped, tag = 'output window, operand 0, single buffered']
    #allocation4 [shape = 's32[1]{0}', space=sflag, size = 0x4, scoped, tag = 'scoped memory for tpu_custom_call.1']
    %12 = vsyncpa [#allocation4], 0
    // Predicated region
    $region2: #{tpu_custom_call.1} parent=1 // pred_check
      _
    $region3: #{tpu_custom_call.1} parent=1 // pred_check_branch
      %14 = sbr.rel (0) target = $region5
    $region4: #{tpu_custom_call.1} parent=1 // pred_region
      _
    $region5: #{tpu_custom_call.1} parent=1 // pred_fallthru
      _
    // Predicated region
    $region6: #{tpu_custom_call.1} parent=1 // pred_check
      _
    $region7: #{tpu_custom_call.1} parent=1 // pred_check_branch
      %16 = sbr.rel (0) target = $region9
    $region8: #{tpu_custom_call.1} parent=1 // pred_region
      _
    $region9: #{tpu_custom_call.1} parent=1 // pred_fallthru
      _
    // Predicated region
    $region10: #{tpu_custom_call.1} parent=1 // pred_check
      _
    $region11: #{tpu_custom_call.1} parent=1 // pred_check_branch
      %18 = sbr.rel (0) target = $region13
    $region12: #{tpu_custom_call.1} parent=1 // pred_region
      _
    $region13: #{tpu_custom_call.1} parent=1 // pred_fallthru
      _
    // Predicated region
    $region14: #{tpu_custom_call.1} parent=1 // pred_check
      _
    $region15: #{tpu_custom_call.1} parent=1 // pred_check_branch
      %20 = sbr.rel (0) target = $region17
    $region16: #{tpu_custom_call.1} parent=1 // pred_region
      _
    $region17: #{tpu_custom_call.1} parent=1 // pred_fallthru
      _
    // Predicated region
    $region18: #{tpu_custom_call.1} parent=1 // pred_check
      _
    $region19: #{tpu_custom_call.1} parent=1 // pred_check_branch
      %22 = sbr.rel (0) target = $region21
    $region20: #{tpu_custom_call.1} parent=1 // pred_region
      _
    $region21: #{tpu_custom_call.1} parent=1 // pred_fallthru
      _
    %v23 = vld [vmem:[%s0] sm:$0xff]
    %v24 = vld [vmem:[%s1] sm:$0xff]
    %v25 = vld [vmem:[%s1 + $0x8] sm:$0xff]
    %v26 = vld [vmem:[%s1 + $0x10] sm:$0xff]
    %v27 = vld [vmem:[%s1 + $0x18] sm:$0xff]
    %v28 = vld [vmem:[%s1 + $0x20] sm:$0xff]
    %v29 = vld [vmem:[%s1 + $0x28] sm:$0xff]
    %v30 = vld [vmem:[%s1 + $0x30] sm:$0xff]
    %v31 = vld [vmem:[%s1 + $0x38] sm:$0xff]
    %v32 = vld [vmem:[%s1 + $0x40] sm:$0xff]
    %v33 = vld [vmem:[%s1 + $0x48] sm:$0xff]
    %v34 = vld [vmem:[%s1 + $0x50] sm:$0xff]
    %v35 = vld [vmem:[%s1 + $0x58] sm:$0xff]
    %v36 = vld [vmem:[%s1 + $0x60] sm:$0xff]
    %v37 = vld [vmem:[%s1 + $0x68] sm:$0xff]
    %v38 = vld [vmem:[%s1 + $0x70] sm:$0xff]
    %v39 = vld [vmem:[%s1 + $0x78] sm:$0xff]
    %v40 = vld [vmem:[%s2] sm:$0x1]
    %v42 = vlaneseq
    %v43 = vshrl.u32 %v42, 7
    %v44 = vsub.s32 0, %v43
    %v45 = vrot.slane %v40, %v44
    %47 = vmatprep.subr.mxu0 0.0
    %48 = vmatpush1.msra.mxu0 %v24
    %49 = vmatprep.subr.mxu0 0.0
    %50 = vmatpush1.msra.mxu0 %v25
    %51 = vmatprep.subr.mxu0 0.0
    %52 = vmatpush1.msra.mxu0 %v26
    %53 = vmatprep.subr.mxu0 0.0
    %54 = vmatpush1.msra.mxu0 %v27
    %55 = vmatprep.subr.mxu0 0.0
    %56 = vmatpush1.msra.mxu0 %v28
    %57 = vmatprep.subr.mxu0 0.0
    %58 = vmatpush1.msra.mxu0 %v29
    %59 = vmatprep.subr.mxu0 0.0
    %60 = vmatpush1.msra.mxu0 %v30
    %61 = vmatprep.subr.mxu0 0.0
    %62 = vmatpush1.msra.mxu0 %v31
    %63 = vmatprep.subr.mxu0 0.0
    %64 = vmatpush1.msra.mxu0 %v32
    %65 = vmatprep.subr.mxu0 0.0
    %66 = vmatpush1.msra.mxu0 %v33
    %67 = vmatprep.subr.mxu0 0.0
    %68 = vmatpush1.msra.mxu0 %v34
    %69 = vmatprep.subr.mxu0 0.0
    %70 = vmatpush1.msra.mxu0 %v35
    %71 = vmatprep.subr.mxu0 0.0
    %72 = vmatpush1.msra.mxu0 %v36
    %73 = vmatprep.subr.mxu0 0.0
    %74 = vmatpush1.msra.mxu0 %v37
    %75 = vmatprep.subr.mxu0 0.0
    %76 = vmatpush1.msra.mxu0 %v38
    %77 = vmatprep.subr.mxu0 0.0
    %78 = vmatpush1.msra.mxu0 %v39
    %79 = vmatprep.subr.mxu0 0.0
    %80 = vmatpush1.msra.mxu0 0.0
    %81 = vmatprep.subr.mxu0 0.0
    %82 = vmatpush1.msra.mxu0 0.0
    %83 = vmatprep.subr.mxu0 0.0
    %84 = vmatpush1.msra.mxu0 0.0
    %85 = vmatprep.subr.mxu0 0.0
    %86 = vmatpush1.msra.mxu0 0.0
    %87 = vmatprep.subr.mxu0 0.0
    %88 = vmatpush1.msra.mxu0 0.0
    %89 = vmatprep.subr.mxu0 0.0
    %90 = vmatpush1.msra.mxu0 0.0
    %91 = vmatprep.subr.mxu0 0.0
    %92 = vmatpush1.msra.mxu0 0.0
    %93 = vmatprep.subr.mxu0 0.0
    %94 = vmatpush1.msra.mxu0 0.0
    %95 = vmatprep.subr.mxu0 0.0
    %96 = vmatpush1.msra.mxu0 0.0
    %97 = vmatprep.subr.mxu0 0.0
    %98 = vmatpush1.msra.mxu0 0.0
    %99 = vmatprep.subr.mxu0 0.0
    %100 = vmatpush1.msra.mxu0 0.0
    %101 = vmatprep.subr.mxu0 0.0
    %102 = vmatpush1.msra.mxu0 0.0
    %103 = vmatprep.subr.mxu0 0.0
    %104 = vmatpush1.msra.mxu0 0.0
    %105 = vmatprep.subr.mxu0 0.0
    %106 = vmatpush1.msra.mxu0 0.0
    %107 = vmatprep.subr.mxu0 0.0
    %108 = vmatpush1.msra.mxu0 0.0
    %109 = vmatprep.subr.mxu0 0.0
    %110 = vmatpush1.msra.mxu0 0.0
    %111 = vmatprep.mubr.f32.mxu0 0.0
    %112 = vmatmul.mubr.f32.gmra.mrb[0].mxu0 %v23
    %v113 = vpop.f32.mrb[0].mxu0
    %v114 = vadd.f32 %v45, %v113
    %v115 = vpop.f32.mrb[0].mxu0
    %116 = vdwg.mxu0
    %v117 = vmax.f32 %v114, 0.0
    %v118 = vld [vmem:[%s3] sm:$0xff]
    %v119 = vld [vmem:[%s3 + $0x8] sm:$0xff]
    %v120 = vld [vmem:[%s3 + $0x10] sm:$0xff]
    %v121 = vld [vmem:[%s3 + $0x18] sm:$0xff]
    %v122 = vld [vmem:[%s3 + $0x20] sm:$0xff]
    %v123 = vld [vmem:[%s3 + $0x28] sm:$0xff]
    %v124 = vld [vmem:[%s3 + $0x30] sm:$0xff]
    %v125 = vld [vmem:[%s3 + $0x38] sm:$0xff]
    %v126 = vld [vmem:[#allocation2] sm:$0x1]
    %v128 = vlaneseq
    %v129 = vshrl.u32 %v128, 7
    %v130 = vsub.s32 0, %v129
    %v131 = vrot.slane %v126, %v130
    %132 = vset.pattern.permute.xlu0 0
    %133 = vperm.xlu0 %132, %v131
    %v134 = vpop.permute.xlu0 %133
    %vm136 = vcmask 523264
    %v138 = vsel %vm136, %v117, 0
    %140 = vmatprep.subr.mxu0 0.0
    %141 = vmatpush1.msra.mxu0 %v118
    %142 = vmatprep.subr.mxu0 0.0
    %143 = vmatpush1.msra.mxu0 %v119
    %144 = vmatprep.subr.mxu0 0.0
    %145 = vmatpush1.msra.mxu0 %v120
    %146 = vmatprep.subr.mxu0 0.0
    %147 = vmatpush1.msra.mxu0 %v121
    %148 = vmatprep.subr.mxu0 0.0
    %149 = vmatpush1.msra.mxu0 %v122
    %150 = vmatprep.subr.mxu0 0.0
    %151 = vmatpush1.msra.mxu0 %v123
    %152 = vmatprep.subr.mxu0 0.0
    %153 = vmatpush1.msra.mxu0 %v124
    %154 = vmatprep.subr.mxu0 0.0
    %155 = vmatpush1.msra.mxu0 %v125
    %156 = vmatprep.subr.mxu0 0.0
    %157 = vmatpush1.msra.mxu0 0.0
    %158 = vmatprep.subr.mxu0 0.0
    %159 = vmatpush1.msra.mxu0 0.0
    %160 = vmatprep.subr.mxu0 0.0
    %161 = vmatpush1.msra.mxu0 0.0
    %162 = vmatprep.subr.mxu0 0.0
    %163 = vmatpush1.msra.mxu0 0.0
    %164 = vmatprep.subr.mxu0 0.0
    %165 = vmatpush1.msra.mxu0 0.0
    %166 = vmatprep.subr.mxu0 0.0
    %167 = vmatpush1.msra.mxu0 0.0
    %168 = vmatprep.subr.mxu0 0.0
    %169 = vmatpush1.msra.mxu0 0.0
    %170 = vmatprep.subr.mxu0 0.0
    %171 = vmatpush1.msra.mxu0 0.0
    %172 = vmatprep.subr.mxu0 0.0
    %173 = vmatpush1.msra.mxu0 0.0
    %174 = vmatprep.subr.mxu0 0.0
    %175 = vmatpush1.msra.mxu0 0.0
    %176 = vmatprep.subr.mxu0 0.0
    %177 = vmatpush1.msra.mxu0 0.0
    %178 = vmatprep.subr.mxu0 0.0
    %179 = vmatpush1.msra.mxu0 0.0
    %180 = vmatprep.subr.mxu0 0.0
    %181 = vmatpush1.msra.mxu0 0.0
    %182 = vmatprep.subr.mxu0 0.0
    %183 = vmatpush1.msra.mxu0 0.0
    %184 = vmatprep.subr.mxu0 0.0
    %185 = vmatpush1.msra.mxu0 0.0
    %186 = vmatprep.subr.mxu0 0.0
    %187 = vmatpush1.msra.mxu0 0.0
    %188 = vmatprep.subr.mxu0 0.0
    %189 = vmatpush1.msra.mxu0 0.0
    %190 = vmatprep.subr.mxu0 0.0
    %191 = vmatpush1.msra.mxu0 0.0
    %192 = vmatprep.subr.mxu0 0.0
    %193 = vmatpush1.msra.mxu0 0.0
    %194 = vmatprep.subr.mxu0 0.0
    %195 = vmatpush1.msra.mxu0 0.0
    %196 = vmatprep.subr.mxu0 0.0
    %197 = vmatpush1.msra.mxu0 0.0
    %198 = vmatprep.subr.mxu0 0.0
    %199 = vmatpush1.msra.mxu0 0.0
    %200 = vmatprep.subr.mxu0 0.0
    %201 = vmatpush1.msra.mxu0 0.0
    %202 = vmatprep.subr.mxu0 0.0
    %203 = vmatpush1.msra.mxu0 0.0
    %204 = vmatprep.mubr.f32.mxu0 0.0
    %205 = vmatmul.mubr.f32.gmra.mrb[0].mxu0 %v138
    %v206 = vpop.f32.mrb[0].mxu0
    %v207 = vadd.f32 %v134, %v206
    %v208 = vpop.f32.mrb[0].mxu0
    %209 = vdwg.mxu0
    %vm210 = vcmask 31744
    %211 = vst.msk [vmem:[#allocation3] sm:$0xff] %vm210, %v207
    // Predicated region
    $region22: #{tpu_custom_call.1} parent=1 // pred_check
      _
    $region23: #{tpu_custom_call.1} parent=1 // pred_check_branch
      %213 = sbr.rel (0) target = $region25
    $region24: #{tpu_custom_call.1} parent=1 // pred_region
      %s215 = ssub.s32 128, 32
      %216 = vsyncadd [#allocation4], %s215
      %s217 = sshll.u32 [#allocation3], 4
      %s218 = int_to_ptr.vmem [resolvable:$true] %s217
      %223 = dma.vmem_to_hbm [thread:$0]  %s218, 32, %s5, [#allocation4], 32, 32, 2
    $region25: #{tpu_custom_call.1} parent=1 // pred_fallthru
      _
    // Predicated region
    $region26: #{tpu_custom_call.1} parent=1 // pred_check
      _
    $region27: #{tpu_custom_call.1} parent=1 // pred_check_branch
      %225 = sbr.rel (0) target = $region29
    $region28: #{tpu_custom_call.1} parent=1 // pred_region
      %226 = dma.done [#allocation4], 128
    $region29: #{tpu_custom_call.1} parent=1 // pred_fallthru
      _
    %227 = vsyncpa [#allocation4], 1

</llo_original>
